<compile_context>
chip_gen: v6e
topology: v6e:2x2x1
jax: 0.10.0
libtpu: 0.0.40
codegen_flags: <defaults>
</compile_context>

<pallas_src>
import functools

import jax
import jax.numpy as jnp
from jax import lax
from jax.experimental import pallas as pl
from jax.experimental.pallas import tpu as pltpu

_LANE = 128          # lane tile (fast axis)
_BLOCK_ROWS = 512    # sublane rows per grid step (256 KiB/buffer at f32)


def _dropout_kernel(seed_ref, x_ref, o_ref, *, threshold, scale):
    """Elementwise inverted dropout for one (block_rows, 128) tile.

    Randomness: murmur3-style finalizer over the *global* element index mixed
    with the seed, so the mask depends only on (seed, element index) — not on
    the chosen tiling — and lowers on both Mosaic and the CPU interpreter.
    """
    blk_rows, lanes = x_ref.shape
    row = lax.broadcasted_iota(jnp.int32, (blk_rows, lanes), 0)
    lane = lax.broadcasted_iota(jnp.int32, (blk_rows, lanes), 1)
    base_row = pl.program_id(0) * blk_rows
    gidx = ((base_row + row) * lanes + lane).astype(jnp.uint32)

    h = gidx * jnp.uint32(0x9E3779B9) + seed_ref[0].astype(jnp.uint32)
    h = h ^ lax.shift_right_logical(h, jnp.uint32(16))
    h = h * jnp.uint32(0x85EBCA6B)
    h = h ^ lax.shift_right_logical(h, jnp.uint32(13))
    h = h * jnp.uint32(0xC2B2AE35)
    h = h ^ lax.shift_right_logical(h, jnp.uint32(16))

    keep = h >= jnp.uint32(threshold)            # P(keep) = 1 - p (exact in u32)
    x = x_ref[...]
    scale_c = jnp.asarray(scale, x.dtype)        # dtype-native math (no f32 upcast)
    o_ref[...] = jnp.where(keep, x * scale_c, jnp.zeros((), x.dtype))


def dropout_v2(x, seed_scalar_i32, *, p=0.5, training=True):
    """Forward of DropoutV2. Eval mode (or p==0) is identity; p>=1 zeroes."""
    if not training or p == 0.0:
        return x
    if p >= 1.0:
        return jnp.zeros_like(x)

    orig_shape = x.shape
    n = x.size
    xf = jnp.ravel(x)
    pad = (-n) % _LANE
    if pad:  # only for element counts not divisible by 128 (not the demo case)
        xf = jnp.pad(xf, (0, pad))
    rows = xf.size // _LANE
    x2 = xf.reshape(rows, _LANE)

    # Biggest lane-dense block that fits comfortably in VMEM; whole array if small.
    block_rows = rows if rows <= _BLOCK_ROWS else _BLOCK_ROWS
    grid = pl.cdiv(rows, block_rows)

    threshold = min(int(round(p * 2.0 ** 32)), 2 ** 32 - 1)
    scale = 1.0 / (1.0 - p)

    seed_arr = jnp.asarray([seed_scalar_i32], dtype=jnp.int32)

    out2 = pl.pallas_call(
        functools.partial(_dropout_kernel, threshold=threshold, scale=scale),
        out_shape=jax.ShapeDtypeStruct((rows, _LANE), x.dtype),
        grid_spec=pltpu.PrefetchScalarGridSpec(
            num_scalar_prefetch=1,
            grid=(grid,),
            in_specs=[pl.BlockSpec((block_rows, _LANE), lambda i, s: (i, 0))],
            out_specs=pl.BlockSpec((block_rows, _LANE), lambda i, s: (i, 0)),
        ),
        # seed is input 0, x2 is input 1 -> write the result into x2's buffer.
        input_output_aliases={1: 0},
        compiler_params=pltpu.CompilerParams(
            dimension_semantics=("parallel",)),
    )(seed_arr, x2)

    if pad:
        return out2.reshape(-1)[:n].reshape(orig_shape)
    return out2.reshape(orig_shape)


class DropoutV2Pallas:
    """Mirror of the PyTorch DropoutV2 module (parameters built in-script)."""

    def __init__(self, p=0.5, inplace=False, max_seed=2 ** 10 - 1,
                 key=jax.random.PRNGKey(1234)):
        self.p = p
        self.inplace = inplace
        self.training = True
        # Same-shaped seed buffer as the PyTorch module: uniform in [1, max_seed).
        self.seed = jax.random.uniform(
            key, (32 * 1024 * 12,), dtype=jnp.float32,
            minval=1.0, maxval=float(max_seed))
        # TODO(synk): the exact Ascend npu_dropoutV2 LCG bit-stream is
        # hardware-specific; a counter-based hash seeded from this buffer is
        # used instead (statistically equivalent inverted dropout).

    def __call__(self, x):
        if not self.training:
            return x
        seed_scalar = self.seed[0].astype(jnp.int32)
        return dropout_v2(x, seed_scalar, p=self.p, training=self.training)


if __name__ == "__main__":
    key = jax.random.PRNGKey(0)
    x = jax.random.normal(key, (2, 4, 16, 16), dtype=jnp.float32)  # NCHW

    m = DropoutV2Pallas(p=0.5)
    y = jax.block_until_ready(m(x))

    assert y.shape == x.shape and y.dtype == x.dtype
    # survivors must be exactly x / (1-p); dropped elements exactly 0
    scaled = x / (1.0 - m.p)
    ok = jnp.all((y == 0) | (jnp.abs(y - scaled) < 1e-5))
    assert bool(ok)
    # sanity: drop fraction close to p
    drop_frac = float(jnp.mean((y == 0).astype(jnp.float32)))
    assert 0.35 < drop_frac < 0.65, drop_frac
    print("KERNEL_OK")
</pallas_src>

<mosaic_0001>
module attributes {stable_mosaic.version = 11 : i64} {
  func.func @_dropout_kernel(%arg0: i32, %arg1: memref<1xi32, #tpu.memory_space<smem>>, %arg2: memref<16x128xf32, #tpu.memory_space<vmem>>, %arg3: memref<16x128xf32, #tpu.memory_space<vmem>>) attributes {dimension_semantics = [#tpu.dimension_semantics<parallel>], iteration_bounds = array<i64: 1>, scalar_prefetch = 1 : i64, scratch_operands = 0 : i64, tpu.core_type = #tpu.core_type<tc>, window_params = [{transform_indices = @transform_0, window_bounds = array<i64: 16, 128>}, {transform_indices = @transform_1, window_bounds = array<i64: 16, 128>}]} {
    %0 = tpu.iota {dimensions = array<i32: 0>} : vector<16x128xi32>
    %1 = tpu.iota {dimensions = array<i32: 1>} : vector<16x128xi32>
    %c16_i32 = arith.constant 16 : i32
    %2 = arith.muli %arg0, %c16_i32 : i32
    %3 = vector.broadcast %2 : i32 to vector<16x128xi32>
    %4 = arith.addi %3, %0 : vector<16x128xi32>
    %c128_i32 = arith.constant 128 : i32
    %5 = vector.broadcast %c128_i32 : i32 to vector<16x128xi32>
    %6 = arith.muli %4, %5 : vector<16x128xi32>
    %7 = arith.addi %6, %1 : vector<16x128xi32>
    %c-1640531527_i32 = arith.constant -1640531527 : i32
    %8 = vector.broadcast %c-1640531527_i32 : i32 to vector<16x128xi32>
    %9 = arith.muli %7, %8 : vector<16x128xi32>
    %c0 = arith.constant 0 : index
    %10 = memref.load %arg1[%c0] : memref<1xi32, #tpu.memory_space<smem>>
    %11 = vector.broadcast %10 : i32 to vector<16x128xi32>
    %12 = arith.addi %9, %11 : vector<16x128xi32>
    %c16_i32_0 = arith.constant 16 : i32
    %13 = vector.broadcast %c16_i32_0 : i32 to vector<16x128xi32>
    %14 = arith.shrui %12, %13 : vector<16x128xi32>
    %15 = arith.xori %12, %14 : vector<16x128xi32>
    %c-2048144789_i32 = arith.constant -2048144789 : i32
    %16 = vector.broadcast %c-2048144789_i32 : i32 to vector<16x128xi32>
    %17 = arith.muli %15, %16 : vector<16x128xi32>
    %c13_i32 = arith.constant 13 : i32
    %18 = vector.broadcast %c13_i32 : i32 to vector<16x128xi32>
    %19 = arith.shrui %17, %18 : vector<16x128xi32>
    %20 = arith.xori %17, %19 : vector<16x128xi32>
    %c-1028477387_i32 = arith.constant -1028477387 : i32
    %21 = vector.broadcast %c-1028477387_i32 : i32 to vector<16x128xi32>
    %22 = arith.muli %20, %21 : vector<16x128xi32>
    %c16_i32_1 = arith.constant 16 : i32
    %23 = vector.broadcast %c16_i32_1 : i32 to vector<16x128xi32>
    %24 = arith.shrui %22, %23 : vector<16x128xi32>
    %25 = arith.xori %22, %24 : vector<16x128xi32>
    %c-2147483648_i32 = arith.constant -2147483648 : i32
    %26 = vector.broadcast %c-2147483648_i32 : i32 to vector<16x128xi32>
    %27 = arith.cmpi uge, %25, %26 : vector<16x128xi32>
    %c0_2 = arith.constant 0 : index
    %c0_3 = arith.constant 0 : index
    %28 = vector.load %arg2[%c0_2, %c0_3] : memref<16x128xf32, #tpu.memory_space<vmem>>, vector<16x128xf32>
    %cst = arith.constant 2.000000e+00 : f32
    %29 = vector.broadcast %cst : f32 to vector<16x128xf32>
    %30 = arith.mulf %28, %29 : vector<16x128xf32>
    %cst_4 = arith.constant 0.000000e+00 : f32
    %31 = vector.broadcast %cst_4 : f32 to vector<16x128xf32>
    %32 = arith.select %27, %30, %31 : vector<16x128xi1>, vector<16x128xf32>
    %c0_5 = arith.constant 0 : index
    %c0_6 = arith.constant 0 : index
    %33 = vector.load %arg3[%c0_5, %c0_6] : memref<16x128xf32, #tpu.memory_space<vmem>>, vector<16x128xf32>
    tpu.vector_store %arg3[%c0_5, %c0_6], %32 {strides = array<i32>} : memref<16x128xf32, #tpu.memory_space<vmem>>, vector<16x128xf32>,
    return
  }
  func.func @transform_0(%arg0: i32, %arg1: memref<1xi32, #tpu.memory_space<smem>>) -> (i32, i32) {
    %c0_i32 = arith.constant 0 : i32
    %c0_i32_0 = arith.constant 0 : i32
    return %arg0, %c0_i32 : i32, i32
  }
  func.func @transform_1(%arg0: i32, %arg1: memref<1xi32, #tpu.memory_space<smem>>) -> (i32, i32) {
    %c0_i32 = arith.constant 0 : i32
    %c0_i32_0 = arith.constant 0 : i32
    return %arg0, %c0_i32 : i32, i32
  }
}

</mosaic_0001>

<llo_original>
// kernel: tpu_custom_call.1
$region0: #{tpu_custom_call.1}
  #allocation0 [shape = 'u32[]', space=smem, size = 0x4, offset = 0x4, fixed_abs, tag = 'smem constant byte address 0x4 - core index']
  #allocation1 [shape = 'u32[144,128]{1,0:T(1,128)}', space=vmem, size = 0x12000, scoped, tag = 'internal scratch']
  #allocation2 [shape = 's32[1]{0}', space=sflag, size = 0x4, scoped, tag = 'scoped memory for tpu_custom_call.1']
  #allocation3 [shape = 's32[1]{0:T(128)S(6)}', space=smem, size = 0x200, scoped, tag = 'prefetched SMEM operand 0']
  %s0 = inlined_call_operand.<no memory space> [shape: s32[1], index: 0, kind: input, shape index: {}]
  %s1 = inlined_call_operand.hbm [shape: f32[16,128], index: 1, kind: input, shape index: {}, may-alias: {1,2}]
  %s2 = inlined_call_operand.hbm [shape: f32[16,128], index: 2, kind: output, shape index: {}, may-alias: {1,2}]
  %s3 = sld [smem:[#allocation0]]
  $region18: #{tpu_custom_call.1} parent=0
    _
  %s5 = ssub.s32 1, %s3
  %s6 = scalar_select 0, %s5, %s3
  %7 = sst [smem:[#allocation3]] %s0
  $region1: #{tpu_custom_call.1} parent=0
    #allocation4 [shape = 'u8[8192]{0}', space=vmem, size = 0x2000, scoped, tag = 'input window, operand 1, single buffered']
    #allocation5 [shape = 's32[1]{0}', space=sflag, size = 0x4, scoped, tag = 'scoped memory for tpu_custom_call.1']
    #allocation6 [shape = 's32[1]{0}', space=sflag, size = 0x4, scoped, tag = 'scoped memory for tpu_custom_call.1']
    #allocation7 [shape = 'u8[8192]{0}', space=vmem, size = 0x2000, scoped, tag = 'output window, operand 0, single buffered']
    %8 = vsyncpa [#allocation5], 0
    %9 = vsyncpa [#allocation6], 0
    // Predicated region
    $region2: #{tpu_custom_call.1} parent=1 // pred_check
      _
    $region3: #{tpu_custom_call.1} parent=1 // pred_check_branch
      %11 = sbr.rel (0) target = $region5
    $region4: #{tpu_custom_call.1} parent=1 // pred_region
      %s13 = ssub.s32 256, 256
      %14 = vsyncadd [#allocation5], %s13
      %s15 = sshll.u32 [#allocation4], 4
      %s16 = int_to_ptr.vmem [resolvable:$true] %s15
      %21 = dma.hbm_to_vmem [thread:$0]  %s1, 256, %s16, [#allocation5], 128, 128, 8
    $region5: #{tpu_custom_call.1} parent=1 // pred_fallthru
      _
    // Predicated region
    $region6: #{tpu_custom_call.1} parent=1 // pred_check
      _
    $region7: #{tpu_custom_call.1} parent=1 // pred_check_branch
      %23 = sbr.rel (0) target = $region9
    $region8: #{tpu_custom_call.1} parent=1 // pred_region
      %24 = dma.done [#allocation5], 256
    $region9: #{tpu_custom_call.1} parent=1 // pred_fallthru
      _
    %v25 = vlaneseq
    %v26 = vshrl.u32 %v25, 7
    %v27 = vadd.s32 %v26, 8
    %v28 = vlaneseq
    %v29 = vand.u32 %v28, 127
    %s30 = smul.u32 0, 16
    %v31 = vstv %s30
    %v32 = vadd.s32 %v31, %v26
    %v33 = vadd.s32 %v31, %v27
    %v34 = vmul.u32 %v32, 128
    %v35 = vmul.u32 %v33, 128
    %v36 = vadd.s32 %v34, %v29
    %v37 = vadd.s32 %v35, %v29
    %v38 = vmul.u32 %v36, 2654435769
    %v39 = vmul.u32 %v37, 2654435769
    %s40 = sld [smem:[#allocation3]]
    %v41 = vstv %s40
    %v42 = vadd.s32 %v38, %v41
    %v43 = vadd.s32 %v39, %v41
    %v44 = vshrl.u32 %v42, 16
    %v45 = vshrl.u32 %v43, 16
    %v46 = vxor.u32 %v42, %v44
    %v47 = vxor.u32 %v43, %v45
    %v48 = vmul.u32 %v46, 2246822507
    %v49 = vmul.u32 %v47, 2246822507
    %v50 = vshrl.u32 %v48, 13
    %v51 = vshrl.u32 %v49, 13
    %v52 = vxor.u32 %v48, %v50
    %v53 = vxor.u32 %v49, %v51
    %v54 = vmul.u32 %v52, 3266489909
    %v55 = vmul.u32 %v53, 3266489909
    %v56 = vshrl.u32 %v54, 16
    %v57 = vshrl.u32 %v55, 16
    %v58 = vxor.u32 %v54, %v56
    %v59 = vxor.u32 %v55, %v57
    %vm60 = vcmp.ge.u32.totalorder %v58, 2147483648
    %vm61 = vcmp.ge.u32.totalorder %v59, 2147483648
    %v62 = vld [vmem:[#allocation4] sm:$0xff]
    %v63 = vld [vmem:[#allocation4 + $0x8] sm:$0xff]
    %v64 = vmul.f32 %v62, 2.0
    %v65 = vmul.f32 %v63, 2.0
    %v66 = vsel %vm60, %v64, 0.0
    %v67 = vsel %vm61, %v65, 0.0
    %68 = vst [vmem:[#allocation7] sm:$0xff] %v66
    %69 = vst [vmem:[#allocation7 + $0x8] sm:$0xff] %v67
    // Predicated region
    $region10: #{tpu_custom_call.1} parent=1 // pred_check
      _
    $region11: #{tpu_custom_call.1} parent=1 // pred_check_branch
      %71 = sbr.rel (0) target = $region13
    $region12: #{tpu_custom_call.1} parent=1 // pred_region
      %s73 = ssub.s32 256, 256
      %74 = vsyncadd [#allocation6], %s73
      %s75 = sshll.u32 [#allocation7], 4
      %s76 = int_to_ptr.vmem [resolvable:$true] %s75
      %81 = dma.vmem_to_hbm [thread:$0]  %s76, 256, %s2, [#allocation6], 128, 128, 8
    $region13: #{tpu_custom_call.1} parent=1 // pred_fallthru
      _
    // Predicated region
    $region14: #{tpu_custom_call.1} parent=1 // pred_check
      _
    $region15: #{tpu_custom_call.1} parent=1 // pred_check_branch
      %83 = sbr.rel (0) target = $region17
    $region16: #{tpu_custom_call.1} parent=1 // pred_region
      %84 = dma.done [#allocation6], 256
    $region17: #{tpu_custom_call.1} parent=1 // pred_fallthru
      _
    %85 = vsyncpa [#allocation5], 1
    %86 = vsyncpa [#allocation6], 1

</llo_original>
